<compile_context>
chip_gen: v7x
topology: tpu7x:2x2x1
jax: 0.10.0
libtpu: 0.0.40
codegen_flags: <defaults>
</compile_context>

<pallas_src>
import functools

import jax
import jax.numpy as jnp
from jax.experimental import pallas as pl
from jax.experimental.pallas import tpu as pltpu


def _round_up(x, m):
    return ((x + m - 1) // m) * m


def _vmem_capacity_bytes():
    """Physical VMEM of this chip; conservative fallback (v7x per-TC)."""
    try:
        return int(pltpu.get_tpu_info().vmem_capacity_bytes)
    except Exception:
        return 64 << 20


# ----------------------------------------------------------------------------
# Fused Pallas kernel: the whole Linear/ReLU stack on one (tm, K0) row tile.
# ----------------------------------------------------------------------------
def _fused_mlp_kernel(x_ref, *refs, relu_flags):
    # x_ref : (tm, K0)  f32 or bf16 activation row tile
    # refs  : w0 (K0, N0) bf16, b0 (1, N0) f32, w1, b1, ..., o_ref
    o_ref = refs[-1]
    wb = refs[:-1]
    h = x_ref[...]
    for layer_idx, relu in enumerate(relu_flags):
        w = wb[2 * layer_idx][...]          # bf16, VMEM-resident across grid
        b = wb[2 * layer_idx + 1][...]      # f32 (1, N)
        y = jnp.dot(h.astype(jnp.bfloat16), w,
                    preferred_element_type=jnp.float32)   # MXU bf16 -> f32 acc
        y = y + b
        if relu:
            y = jnp.maximum(y, 0.0)
        h = y
    o_ref[...] = h.astype(o_ref.dtype)


def fused_mlp_pallas(x2d, kernel_layers):
    """x2d: (M, K0) f32/bf16 activation.
    kernel_layers: list of (w bf16 (K, N), b f32 (1, N), relu) where the first
    layer's K equals K0 and the last layer's N is the TRUE output width.
    Returns (M, n_out) f32."""
    M, K0 = x2d.shape
    n_out = kernel_layers[-1][0].shape[1]
    x_bytes = jnp.dtype(x2d.dtype).itemsize

    # --- Row tile selection ------------------------------------------------
    # M <= 512: one full-extent tile (always layout-legal since the block
    # equals the array extent).  Larger M: at least 2 grid steps (keeps both
    # v7x TensorCores busy) and at most 512-row tiles (best measured HBM
    # utilisation for streamed mem-bound tiles).
    if M <= 512:
        tm = M
    else:
        tm = min(512, _round_up(pl.cdiv(M, 2), 16))
    grid_m = pl.cdiv(M, tm)

    relu_flags = tuple(r for _, _, r in kernel_layers)
    kernel = functools.partial(_fused_mlp_kernel, relu_flags=relu_flags)

    # Input specs: the activation tile streams over the M grid; weights and
    # biases use constant index_maps so they are DMA'd once and stay resident
    # in VMEM for the whole grid.
    in_specs = [pl.BlockSpec((tm, K0), lambda i: (i, 0))]
    operands = [x2d]
    for w_k, b_k, _ in kernel_layers:
        in_specs.append(pl.BlockSpec(w_k.shape, lambda i: (0, 0)))
        in_specs.append(pl.BlockSpec(b_k.shape, lambda i: (0, 0)))
        operands.append(w_k)
        operands.append(b_k)

    # --- VMEM budget ---------------------------------------------------------
    # The default pipeliner still allocates 2 buffers for the grid-invariant
    # weight/bias blocks, so account them twice.
    param_bytes = 2 * sum(int(w.size) * w.dtype.itemsize +
                          int(b.size) * b.dtype.itemsize
                          for w, b, _ in kernel_layers)
    max_width = max([K0] + [w.shape[1] for w, _, _ in kernel_layers])
    stream_bytes = 2 * tm * K0 * x_bytes + 2 * tm * n_out * 4  # dbl-buffered io
    work_bytes = 3 * tm * max_width * 4                        # f32 intermediates
    needed = param_bytes + stream_bytes + work_bytes + (2 << 20)
    cap = _vmem_capacity_bytes() * 3 // 4        # <=48 MiB on v7x, <=96 on v5e/v6e
    vmem_limit = int(min(cap, max(needed, 16 << 20)))

    # --- Cost estimate (helps XLA schedule around the custom call) ----------
    flops = 2 * M * sum(w.shape[0] * w.shape[1] for w, _, _ in kernel_layers)
    bytes_accessed = (M * K0 * x_bytes
                      + sum(int(w.size) * w.dtype.itemsize +
                            int(b.size) * b.dtype.itemsize
                            for w, b, _ in kernel_layers)
                      + M * n_out * 4)
    cost = pl.CostEstimate(flops=flops, transcendentals=0,
                           bytes_accessed=bytes_accessed)

    out = pl.pallas_call(
        kernel,
        out_shape=jax.ShapeDtypeStruct((M, n_out), jnp.float32),
        grid=(grid_m,),
        in_specs=in_specs,
        out_specs=pl.BlockSpec((tm, n_out), lambda i: (i, 0)),
        compiler_params=pltpu.CompilerParams(
            dimension_semantics=("parallel",),
            vmem_limit_bytes=vmem_limit,
        ),
        cost_estimate=cost,
    )(*operands)
    return out


# ----------------------------------------------------------------------------
# MLLinear module (parameter setup + glue in plain JAX).
# ----------------------------------------------------------------------------
class MLLinearPallas:
    def __init__(self, input_size, hidden_sizes=(), output_size=None,
                 squeeze_finally=False, *, key=None):
        self.squeeze_finally = squeeze_finally
        self.input_size = input_size
        sizes = [input_size] + list(hidden_sizes)
        key = key if key is not None else jax.random.PRNGKey(0)

        # Reference (unpadded, f32) params: list of (W (in,out), b (out,), relu)
        self.layers = []

        def make_linear(k, in_s, out_s):
            kw, kb = jax.random.split(k)
            # xavier_uniform_ on the (out, in) weight, stored here as (in, out)
            bound_w = (6.0 / (in_s + out_s)) ** 0.5
            w = jax.random.uniform(kw, (in_s, out_s), jnp.float32,
                                   minval=-bound_w, maxval=bound_w)
            # PyTorch nn.Linear default bias init: U(-1/sqrt(fan_in), ...)
            bound_b = 1.0 / (in_s ** 0.5)
            b = jax.random.uniform(kb, (out_s,), jnp.float32,
                                   minval=-bound_b, maxval=bound_b)
            return w, b

        for in_s, out_s in zip(sizes[:-1], sizes[1:]):
            key, sub = jax.random.split(key)
            w, b = make_linear(sub, in_s, out_s)
            self.layers.append((w, b, True))

        if output_size is not None:
            key, sub = jax.random.split(key)
            w, b = make_linear(sub, sizes[-1], output_size)
            self.layers.append((w, b, False))

        # Kernel-side params.  K of the first layer stays at the true input
        # width (activation streams unpadded from HBM); N of the last layer
        # stays at the true output width (compact HBM write, no slice).
        # Hidden widths are padded to 128 lanes; padded columns stay exactly 0
        # through zero weight columns + zero bias + ReLU, and padded K rows of
        # the next layer are zero, so the result is unchanged.
        self.kernel_layers = []
        n_layers = len(self.layers)
        prev_width = None
        for li, (w, b, relu) in enumerate(self.layers):
            k_in, n_true = w.shape
            k_dim = k_in if li == 0 else prev_width
            n_dim = n_true if li == n_layers - 1 else _round_up(n_true, 128)
            w_k = jnp.zeros((k_dim, n_dim), jnp.float32).at[:k_in, :n_true].set(w)
            b_k = jnp.zeros((1, n_dim), jnp.float32).at[0, :n_true].set(b)
            self.kernel_layers.append((w_k.astype(jnp.bfloat16), b_k, relu))
            prev_width = n_dim

    def __call__(self, inputs, **kwargs):
        x = jnp.asarray(inputs)
        # Stream bf16 inputs as-is (halves activation read bytes); everything
        # else is handled in f32 and cast to bf16 per-tile inside the kernel.
        if x.dtype != jnp.bfloat16 and x.dtype != jnp.float32:
            x = x.astype(jnp.float32)
        lead_shape = x.shape[:-1]
        x2d = x.reshape(-1, x.shape[-1])

        if self.layers:
            y2d = fused_mlp_pallas(x2d, self.kernel_layers)
        else:
            y2d = x2d.astype(jnp.float32)  # Identity (no hiddens, no output_size)

        out = y2d.reshape(lead_shape + (y2d.shape[-1],))
        if self.squeeze_finally:
            # nn.Flatten(-2): merge the last two dims
            out = out.reshape(out.shape[:-2] + (out.shape[-2] * out.shape[-1],))
        return {**kwargs, 'outputs': out}


# ----------------------------------------------------------------------------
# Demo / self-test
# ----------------------------------------------------------------------------
if __name__ == "__main__":
    key = jax.random.PRNGKey(0)
    k_in, k_param = jax.random.split(key)

    # small shapes: batch=2, seq=8, input_size=32
    x = jax.random.normal(k_in, (2, 8, 32), jnp.float32)

    model = MLLinearPallas(input_size=32, hidden_sizes=(64, 48),
                           output_size=16, squeeze_finally=False, key=k_param)

    result = model(x, tag="demo")
    out = jax.block_until_ready(result['outputs'])
    assert out.shape == (2, 8, 16), out.shape

    # Reference 1: same bf16-matmul / f32-accumulate path in plain JAX.
    ref_bf16 = x.reshape(-1, 32)
    for w, b, relu in model.layers:
        ref_bf16 = jnp.dot(ref_bf16.astype(jnp.bfloat16),
                           w.astype(jnp.bfloat16),
                           preferred_element_type=jnp.float32) + b
        if relu:
            ref_bf16 = jnp.maximum(ref_bf16, 0.0)
    ref_bf16 = ref_bf16.reshape(2, 8, 16)
    assert jnp.allclose(out, ref_bf16, atol=2e-3, rtol=2e-3), \
        float(jnp.max(jnp.abs(out - ref_bf16)))

    # Reference 2: full f32 path (PyTorch semantics), looser tolerance for
    # the bf16 matmul inputs.
    ref_f32 = x.reshape(-1, 32)
    for w, b, relu in model.layers:
        ref_f32 = ref_f32 @ w + b
        if relu:
            ref_f32 = jnp.maximum(ref_f32, 0.0)
    ref_f32 = ref_f32.reshape(2, 8, 16)
    assert jnp.allclose(out, ref_f32, atol=5e-2, rtol=5e-2), \
        float(jnp.max(jnp.abs(out - ref_f32)))

    print("KERNEL_OK")
</pallas_src>

<mosaic_0001>
module attributes {stable_mosaic.version = 11 : i64} {
  func.func @_fused_mlp_kernel(%arg0: i32, %arg1: memref<16x32xf32, #tpu.memory_space<vmem>>, %arg2: memref<32x128xbf16, #tpu.memory_space<vmem>>, %arg3: memref<1x128xf32, #tpu.memory_space<vmem>>, %arg4: memref<128x128xbf16, #tpu.memory_space<vmem>>, %arg5: memref<1x128xf32, #tpu.memory_space<vmem>>, %arg6: memref<128x16xbf16, #tpu.memory_space<vmem>>, %arg7: memref<1x16xf32, #tpu.memory_space<vmem>>, %arg8: memref<16x16xf32, #tpu.memory_space<vmem>>) attributes {dimension_semantics = [#tpu.dimension_semantics<parallel>], iteration_bounds = array<i64: 1>, scalar_prefetch = 0 : i64, scratch_operands = 0 : i64, tpu.core_type = #tpu.core_type<tc>, window_params = [{transform_indices = @transform_0, window_bounds = array<i64: 16, 32>}, {pipeline_mode = #tpu.pipeline_mode<synchronous>, transform_indices = @transform_1, window_bounds = array<i64: 32, 128>}, {pipeline_mode = #tpu.pipeline_mode<synchronous>, transform_indices = @transform_2, window_bounds = array<i64: 1, 128>}, {pipeline_mode = #tpu.pipeline_mode<synchronous>, transform_indices = @transform_3, window_bounds = array<i64: 128, 128>}, {pipeline_mode = #tpu.pipeline_mode<synchronous>, transform_indices = @transform_4, window_bounds = array<i64: 1, 128>}, {pipeline_mode = #tpu.pipeline_mode<synchronous>, transform_indices = @transform_5, window_bounds = array<i64: 128, 16>}, {pipeline_mode = #tpu.pipeline_mode<synchronous>, transform_indices = @transform_6, window_bounds = array<i64: 1, 16>}, {transform_indices = @transform_7, window_bounds = array<i64: 16, 16>}]} {
    %c0 = arith.constant 0 : index
    %c0_0 = arith.constant 0 : index
    %0 = vector.load %arg1[%c0, %c0_0] : memref<16x32xf32, #tpu.memory_space<vmem>>, vector<16x32xf32>
    %c0_1 = arith.constant 0 : index
    %c0_2 = arith.constant 0 : index
    %1 = vector.load %arg2[%c0_1, %c0_2] : memref<32x128xbf16, #tpu.memory_space<vmem>>, vector<32x128xbf16>
    %c0_3 = arith.constant 0 : index
    %c0_4 = arith.constant 0 : index
    %2 = vector.load %arg3[%c0_3, %c0_4] : memref<1x128xf32, #tpu.memory_space<vmem>>, vector<1x128xf32>
    %3 = arith.truncf %0 : vector<16x32xf32> to vector<16x32xbf16>
    %cst = arith.constant dense<0.000000e+00> : vector<16x128xf32>
    %4 = tpu.matmul %3, %1, %cst {dimension_numbers = #tpu.dot_dimension_numbers<[1], [0], [0], [1], [0, 0, 1, 1], [], []>} : vector<16x32xbf16>, vector<32x128xbf16>, vector<16x128xf32> -> vector<16x128xf32>
    %5 = vector.broadcast %2 : vector<1x128xf32> to vector<16x128xf32>
    %6 = arith.addf %4, %5 : vector<16x128xf32>
    %cst_5 = arith.constant 0.000000e+00 : f32
    %7 = vector.broadcast %cst_5 : f32 to vector<16x128xf32>
    %8 = arith.maximumf %6, %7 : vector<16x128xf32>
    %c0_6 = arith.constant 0 : index
    %c0_7 = arith.constant 0 : index
    %9 = vector.load %arg4[%c0_6, %c0_7] : memref<128x128xbf16, #tpu.memory_space<vmem>>, vector<128x128xbf16>
    %c0_8 = arith.constant 0 : index
    %c0_9 = arith.constant 0 : index
    %10 = vector.load %arg5[%c0_8, %c0_9] : memref<1x128xf32, #tpu.memory_space<vmem>>, vector<1x128xf32>
    %11 = arith.truncf %8 : vector<16x128xf32> to vector<16x128xbf16>
    %cst_10 = arith.constant dense<0.000000e+00> : vector<16x128xf32>
    %12 = tpu.matmul %11, %9, %cst_10 {dimension_numbers = #tpu.dot_dimension_numbers<[1], [0], [0], [1], [0, 0, 1, 1], [], []>} : vector<16x128xbf16>, vector<128x128xbf16>, vector<16x128xf32> -> vector<16x128xf32>
    %13 = vector.broadcast %10 : vector<1x128xf32> to vector<16x128xf32>
    %14 = arith.addf %12, %13 : vector<16x128xf32>
    %cst_11 = arith.constant 0.000000e+00 : f32
    %15 = vector.broadcast %cst_11 : f32 to vector<16x128xf32>
    %16 = arith.maximumf %14, %15 : vector<16x128xf32>
    %c0_12 = arith.constant 0 : index
    %c0_13 = arith.constant 0 : index
    %17 = vector.load %arg6[%c0_12, %c0_13] : memref<128x16xbf16, #tpu.memory_space<vmem>>, vector<128x16xbf16>
    %c0_14 = arith.constant 0 : index
    %c0_15 = arith.constant 0 : index
    %18 = vector.load %arg7[%c0_14, %c0_15] : memref<1x16xf32, #tpu.memory_space<vmem>>, vector<1x16xf32>
    %19 = arith.truncf %16 : vector<16x128xf32> to vector<16x128xbf16>
    %cst_16 = arith.constant dense<0.000000e+00> : vector<16x16xf32>
    %20 = tpu.matmul %19, %17, %cst_16 {dimension_numbers = #tpu.dot_dimension_numbers<[1], [0], [0], [1], [0, 0, 1, 1], [], []>} : vector<16x128xbf16>, vector<128x16xbf16>, vector<16x16xf32> -> vector<16x16xf32>
    %21 = vector.broadcast %18 : vector<1x16xf32> to vector<16x16xf32>
    %22 = arith.addf %20, %21 : vector<16x16xf32>
    %c0_17 = arith.constant 0 : index
    %c0_18 = arith.constant 0 : index
    %23 = vector.load %arg8[%c0_17, %c0_18] : memref<16x16xf32, #tpu.memory_space<vmem>>, vector<16x16xf32>
    tpu.vector_store %arg8[%c0_17, %c0_18], %22 {strides = array<i32>} : memref<16x16xf32, #tpu.memory_space<vmem>>, vector<16x16xf32>,
    return
  }
  func.func @transform_0(%arg0: i32) -> (i32, i32) {
    %c0_i32 = arith.constant 0 : i32
    %c0_i32_0 = arith.constant 0 : i32
    return %arg0, %c0_i32 : i32, i32
  }
  func.func @transform_1(%arg0: i32) -> (i32, i32) {
    %c0_i32 = arith.constant 0 : i32
    %c0_i32_0 = arith.constant 0 : i32
    %c0_i32_1 = arith.constant 0 : i32
    return %c0_i32, %c0_i32_0 : i32, i32
  }
  func.func @transform_2(%arg0: i32) -> (i32, i32) {
    %c0_i32 = arith.constant 0 : i32
    %c0_i32_0 = arith.constant 0 : i32
    %c0_i32_1 = arith.constant 0 : i32
    return %c0_i32, %c0_i32_0 : i32, i32
  }
  func.func @transform_3(%arg0: i32) -> (i32, i32) {
    %c0_i32 = arith.constant 0 : i32
    %c0_i32_0 = arith.constant 0 : i32
    %c0_i32_1 = arith.constant 0 : i32
    return %c0_i32, %c0_i32_0 : i32, i32
  }
  func.func @transform_4(%arg0: i32) -> (i32, i32) {
    %c0_i32 = arith.constant 0 : i32
    %c0_i32_0 = arith.constant 0 : i32
    %c0_i32_1 = arith.constant 0 : i32
    return %c0_i32, %c0_i32_0 : i32, i32
  }
  func.func @transform_5(%arg0: i32) -> (i32, i32) {
    %c0_i32 = arith.constant 0 : i32
    %c0_i32_0 = arith.constant 0 : i32
    %c0_i32_1 = arith.constant 0 : i32
    return %c0_i32, %c0_i32_0 : i32, i32
  }
  func.func @transform_6(%arg0: i32) -> (i32, i32) {
    %c0_i32 = arith.constant 0 : i32
    %c0_i32_0 = arith.constant 0 : i32
    %c0_i32_1 = arith.constant 0 : i32
    return %c0_i32, %c0_i32_0 : i32, i32
  }
  func.func @transform_7(%arg0: i32) -> (i32, i32) {
    %c0_i32 = arith.constant 0 : i32
    %c0_i32_0 = arith.constant 0 : i32
    return %arg0, %c0_i32 : i32, i32
  }
}

</mosaic_0001>

<llo_original>
// kernel: tpu_custom_call.1
$region0: #{tpu_custom_call.1}
  #allocation0 [shape = 'u32[]', space=smem, size = 0x4, offset = 0x4, fixed_abs, tag = 'smem constant byte address 0x4 - core index']
  #allocation1 [shape = 'u32[144,128]{1,0:T(1,128)}', space=vmem, size = 0x12000, scoped, tag = 'internal scratch']
  %s0 = inlined_call_operand.vmem [shape: f32[16,32], index: 0, kind: input, shape index: {}]
  %s1 = inlined_call_operand.hbm [shape: bf16[32,128], index: 1, kind: input, shape index: {}]
  %s2 = inlined_call_operand.vmem [shape: f32[1,128], index: 2, kind: input, shape index: {}]
  %s3 = inlined_call_operand.vmem [shape: bf16[128,128], index: 3, kind: input, shape index: {}]
  %s4 = inlined_call_operand.vmem [shape: f32[1,128], index: 4, kind: input, shape index: {}]
  %s5 = inlined_call_operand.vmem [shape: bf16[128,16], index: 5, kind: input, shape index: {}]
  %s6 = inlined_call_operand.vmem [shape: f32[1,16], index: 6, kind: input, shape index: {}]
  %s7 = inlined_call_operand.hbm [shape: f32[16,16], index: 7, kind: output, shape index: {}]
  %s8 = sld [smem:[#allocation0]]
  $region42: #{tpu_custom_call.1} parent=0
    _
  %s10 = ssub.s32 1, %s8
  %s11 = scalar_select 0, %s10, %s8
  $region1: #{tpu_custom_call.1} parent=0
    #allocation2 [shape = 'u8[8192]{0}', space=vmem, size = 0x2000, scoped, tag = 'input window, operand 1, single buffered']
    #allocation3 [shape = 's32[1]{0}', space=sflag, size = 0x4, scoped, tag = 'scoped memory for tpu_custom_call.1']
    #allocation4 [shape = 's32[1]{0}', space=sflag, size = 0x4, scoped, tag = 'scoped memory for tpu_custom_call.1']
    #allocation5 [shape = 'u8[8192]{0}', space=vmem, size = 0x2000, scoped, tag = 'output window, operand 0, single buffered']
    %12 = vsyncpa [#allocation3], 0
    %13 = vsyncpa [#allocation4], 0
    // Predicated region
    $region2: #{tpu_custom_call.1} parent=1 // pred_check
      _
    $region3: #{tpu_custom_call.1} parent=1 // pred_check_branch
      %15 = sbr.rel (0) target = $region5
    $region4: #{tpu_custom_call.1} parent=1 // pred_region
      _
    $region5: #{tpu_custom_call.1} parent=1 // pred_fallthru
      _
    // Predicated region
    $region6: #{tpu_custom_call.1} parent=1 // pred_check
      _
    $region7: #{tpu_custom_call.1} parent=1 // pred_check_branch
      %17 = sbr.rel (0) target = $region9
    $region8: #{tpu_custom_call.1} parent=1 // pred_region
      %s19 = ssub.s32 256, 256
      %20 = vsyncadd [#allocation3], %s19
      %s21 = sshll.u32 [#allocation2], 4
      %s22 = int_to_ptr.vmem [resolvable:$true] %s21
      %27 = dma.hbm_to_vmem [thread:$0]  %s1, 256, %s22, [#allocation3], 64, 64, 4
    $region9: #{tpu_custom_call.1} parent=1 // pred_fallthru
      _
    // Predicated region
    $region10: #{tpu_custom_call.1} parent=1 // pred_check
      _
    $region11: #{tpu_custom_call.1} parent=1 // pred_check_branch
      %29 = sbr.rel (0) target = $region13
    $region12: #{tpu_custom_call.1} parent=1 // pred_region
      _
    $region13: #{tpu_custom_call.1} parent=1 // pred_fallthru
      _
    // Predicated region
    $region14: #{tpu_custom_call.1} parent=1 // pred_check
      _
    $region15: #{tpu_custom_call.1} parent=1 // pred_check_branch
      %31 = sbr.rel (0) target = $region17
    $region16: #{tpu_custom_call.1} parent=1 // pred_region
      _
    $region17: #{tpu_custom_call.1} parent=1 // pred_fallthru
      _
    // Predicated region
    $region18: #{tpu_custom_call.1} parent=1 // pred_check
      _
    $region19: #{tpu_custom_call.1} parent=1 // pred_check_branch
      %33 = sbr.rel (0) target = $region21
    $region20: #{tpu_custom_call.1} parent=1 // pred_region
      _
    $region21: #{tpu_custom_call.1} parent=1 // pred_fallthru
      _
    // Predicated region
    $region22: #{tpu_custom_call.1} parent=1 // pred_check
      _
    $region23: #{tpu_custom_call.1} parent=1 // pred_check_branch
      %35 = sbr.rel (0) target = $region25
    $region24: #{tpu_custom_call.1} parent=1 // pred_region
      _
    $region25: #{tpu_custom_call.1} parent=1 // pred_fallthru
      _
    // Predicated region
    $region26: #{tpu_custom_call.1} parent=1 // pred_check
      _
    $region27: #{tpu_custom_call.1} parent=1 // pred_check_branch
      %37 = sbr.rel (0) target = $region29
    $region28: #{tpu_custom_call.1} parent=1 // pred_region
      _
    $region29: #{tpu_custom_call.1} parent=1 // pred_fallthru
      _
    // Predicated region
    $region30: #{tpu_custom_call.1} parent=1 // pred_check
      _
    $region31: #{tpu_custom_call.1} parent=1 // pred_check_branch
      %39 = sbr.rel (0) target = $region33
    $region32: #{tpu_custom_call.1} parent=1 // pred_region
      %40 = dma.done [#allocation3], 256
    $region33: #{tpu_custom_call.1} parent=1 // pred_fallthru
      _
    %v42 = vld [vmem:[%s0] sm:$0xff]
    %v43 = vld [vmem:[%s0 + $0x8] sm:$0xff]
    %v44 = vld [vmem:[#allocation2] sm:$0xf]
    %v45 = vld [vmem:[#allocation2 + $0x4] sm:$0xf]
    %v46 = vld [vmem:[#allocation2 + $0x8] sm:$0xf]
    %v47 = vld [vmem:[#allocation2 + $0xc] sm:$0xf]
    %v48 = vld [vmem:[%s2] sm:$0x1]
    %v49 = vpack.c.bf16 %v43, %v42
    %v51 = vlaneseq
    %v52 = vshrl.u32 %v51, 7
    %v53 = vsub.s32 0, %v52
    %v54 = vrot.slane %v48, %v53
    %v60 = vunpack.c.l.b16 %v44
    %v61 = vunpack.c.l.b16 %v45
    %v62 = vunpack.c.l.b16 %v46
    %v63 = vunpack.c.l.b16 %v47
    %v64 = vpack.c.b16 %v61, %v60
    %v65 = vpack.c.b16 %v63, %v62
    %vm68 = vcmask 261120
    %v70 = vsel %vm68, %v49, 0
    %72 = vmatprep.subr.bf16.mxu0 0
    %73 = vmatpush1.bf16.msra.mxu0 %v64
    %74 = vmatprep.subr.bf16.mxu0 0
    %75 = vmatpush1.bf16.msra.mxu0 %v65
    %76 = vmatprep.subr.bf16.mxu0 0
    %77 = vmatpush1.bf16.msra.mxu0 0
    %78 = vmatprep.subr.bf16.mxu0 0
    %79 = vmatpush1.bf16.msra.mxu0 0
    %80 = vmatprep.subr.bf16.mxu0 0
    %81 = vmatpush1.bf16.msra.mxu0 0
    %82 = vmatprep.subr.bf16.mxu0 0
    %83 = vmatpush1.bf16.msra.mxu0 0
    %84 = vmatprep.subr.bf16.mxu0 0
    %85 = vmatpush1.bf16.msra.mxu0 0
    %86 = vmatprep.subr.bf16.mxu0 0
    %87 = vmatpush1.bf16.msra.mxu0 0
    %88 = vmatprep.subr.bf16.mxu0 0
    %89 = vmatpush1.bf16.msra.mxu0 0
    %90 = vmatprep.subr.bf16.mxu0 0
    %91 = vmatpush1.bf16.msra.mxu0 0
    %92 = vmatprep.subr.bf16.mxu0 0
    %93 = vmatpush1.bf16.msra.mxu0 0
    %94 = vmatprep.subr.bf16.mxu0 0
    %95 = vmatpush1.bf16.msra.mxu0 0
    %96 = vmatprep.subr.bf16.mxu0 0
    %97 = vmatpush1.bf16.msra.mxu0 0
    %98 = vmatprep.subr.bf16.mxu0 0
    %99 = vmatpush1.bf16.msra.mxu0 0
    %100 = vmatprep.subr.bf16.mxu0 0
    %101 = vmatpush1.bf16.msra.mxu0 0
    %102 = vmatprep.subr.bf16.mxu0 0
    %103 = vmatpush1.bf16.msra.mxu0 0
    %104 = vmatprep.mubr.bf16.mxu0 0
    %105 = vmatmul.mubr.bf16.gmra.mrb[0].mxu0 %v70
    %v106 = vpop.f32.mrb[0].mxu0
    %v107 = vadd.f32 %v54, %v106
    %v108 = vpop.f32.mrb[0].mxu0
    %v109 = vpop.f32.mrb[0].mxu0
    %v110 = vadd.f32 %v54, %v109
    %v111 = vpop.f32.mrb[0].mxu0
    %112 = vdwg.mxu0
    %v113 = vmax.f32 %v107, 0.0
    %v114 = vmax.f32 %v110, 0.0
    %v115 = vld [vmem:[%s3] sm:$0xf]
    %v116 = vld [vmem:[%s3 + $0x4] sm:$0xf]
    %v117 = vld [vmem:[%s3 + $0x8] sm:$0xf]
    %v118 = vld [vmem:[%s3 + $0xc] sm:$0xf]
    %v119 = vld [vmem:[%s3 + $0x10] sm:$0xf]
    %v120 = vld [vmem:[%s3 + $0x14] sm:$0xf]
    %v121 = vld [vmem:[%s3 + $0x18] sm:$0xf]
    %v122 = vld [vmem:[%s3 + $0x1c] sm:$0xf]
    %v123 = vld [vmem:[%s3 + $0x20] sm:$0xf]
    %v124 = vld [vmem:[%s3 + $0x24] sm:$0xf]
    %v125 = vld [vmem:[%s3 + $0x28] sm:$0xf]
    %v126 = vld [vmem:[%s3 + $0x2c] sm:$0xf]
    %v127 = vld [vmem:[%s3 + $0x30] sm:$0xf]
    %v128 = vld [vmem:[%s3 + $0x34] sm:$0xf]
    %v129 = vld [vmem:[%s3 + $0x38] sm:$0xf]
    %v130 = vld [vmem:[%s3 + $0x3c] sm:$0xf]
    %v131 = vld [vmem:[%s4] sm:$0x1]
    %v132 = vpack.c.bf16 %v114, %v113
    %v134 = vlaneseq
    %v135 = vshrl.u32 %v134, 7
    %v136 = vsub.s32 0, %v135
    %v137 = vrot.slane %v131, %v136
    %v155 = vunpack.c.l.b16 %v115
    %v156 = vunpack.c.l.b16 %v116
    %v157 = vunpack.c.l.b16 %v117
    %v158 = vunpack.c.l.b16 %v118
    %v159 = vunpack.c.l.b16 %v119
    %v160 = vunpack.c.l.b16 %v120
    %v161 = vunpack.c.l.b16 %v121
    %v162 = vunpack.c.l.b16 %v122
    %v163 = vunpack.c.l.b16 %v123
    %v164 = vunpack.c.l.b16 %v124
    %v165 = vunpack.c.l.b16 %v125
    %v166 = vunpack.c.l.b16 %v126
    %v167 = vunpack.c.l.b16 %v127
    %v168 = vunpack.c.l.b16 %v128
    %v169 = vunpack.c.l.b16 %v129
    %v170 = vunpack.c.l.b16 %v130
    %v171 = vpack.c.b16 %v156, %v155
    %v172 = vpack.c.b16 %v158, %v157
    %v173 = vpack.c.b16 %v160, %v159
    %v174 = vpack.c.b16 %v162, %v161
    %v175 = vpack.c.b16 %v164, %v163
    %v176 = vpack.c.b16 %v166, %v165
    %v177 = vpack.c.b16 %v168, %v167
    %v178 = vpack.c.b16 %v170, %v169
    %187 = vmatprep.subr.bf16.mxu0 0
    %188 = vmatpush1.bf16.msra.mxu0 %v171
    %189 = vmatprep.subr.bf16.mxu0 0
    %190 = vmatpush1.bf16.msra.mxu0 %v172
    %191 = vmatprep.subr.bf16.mxu0 0
    %192 = vmatpush1.bf16.msra.mxu0 %v173
    %193 = vmatprep.subr.bf16.mxu0 0
    %194 = vmatpush1.bf16.msra.mxu0 %v174
    %195 = vmatprep.subr.bf16.mxu0 0
    %196 = vmatpush1.bf16.msra.mxu0 %v175
    %197 = vmatprep.subr.bf16.mxu0 0
    %198 = vmatpush1.bf16.msra.mxu0 %v176
    %199 = vmatprep.subr.bf16.mxu0 0
    %200 = vmatpush1.bf16.msra.mxu0 %v177
    %201 = vmatprep.subr.bf16.mxu0 0
    %202 = vmatpush1.bf16.msra.mxu0 %v178
    %203 = vmatprep.subr.bf16.mxu0 0
    %204 = vmatpush1.bf16.msra.mxu0 0
    %205 = vmatprep.subr.bf16.mxu0 0
    %206 = vmatpush1.bf16.msra.mxu0 0
    %207 = vmatprep.subr.bf16.mxu0 0
    %208 = vmatpush1.bf16.msra.mxu0 0
    %209 = vmatprep.subr.bf16.mxu0 0
    %210 = vmatpush1.bf16.msra.mxu0 0
    %211 = vmatprep.subr.bf16.mxu0 0
    %212 = vmatpush1.bf16.msra.mxu0 0
    %213 = vmatprep.subr.bf16.mxu0 0
    %214 = vmatpush1.bf16.msra.mxu0 0
    %215 = vmatprep.subr.bf16.mxu0 0
    %216 = vmatpush1.bf16.msra.mxu0 0
    %217 = vmatprep.subr.bf16.mxu0 0
    %218 = vmatpush1.bf16.msra.mxu0 0
    %219 = vmatprep.mubr.bf16.mxu0 0
    %220 = vmatmul.mubr.bf16.gmra.mrb[0].mxu0 %v132
    %v221 = vpop.f32.mrb[0].mxu0
    %v222 = vadd.f32 %v137, %v221
    %v223 = vpop.f32.mrb[0].mxu0
    %v224 = vpop.f32.mrb[0].mxu0
    %v225 = vadd.f32 %v137, %v224
    %v226 = vpop.f32.mrb[0].mxu0
    %227 = vdwg.mxu0
    %v228 = vmax.f32 %v222, 0.0
    %v229 = vmax.f32 %v225, 0.0
    %v230 = vld [vmem:[%s5] sm:$0xf]
    %v231 = vld [vmem:[%s5 + $0x4] sm:$0xf]
    %v232 = vld [vmem:[%s5 + $0x8] sm:$0xf]
    %v233 = vld [vmem:[%s5 + $0xc] sm:$0xf]
    %v234 = vld [vmem:[%s5 + $0x10] sm:$0xf]
    %v235 = vld [vmem:[%s5 + $0x14] sm:$0xf]
    %v236 = vld [vmem:[%s5 + $0x18] sm:$0xf]
    %v237 = vld [vmem:[%s5 + $0x1c] sm:$0xf]
    %v238 = vld [vmem:[%s5 + $0x20] sm:$0xf]
    %v239 = vld [vmem:[%s5 + $0x24] sm:$0xf]
    %v240 = vld [vmem:[%s5 + $0x28] sm:$0xf]
    %v241 = vld [vmem:[%s5 + $0x2c] sm:$0xf]
    %v242 = vld [vmem:[%s5 + $0x30] sm:$0xf]
    %v243 = vld [vmem:[%s5 + $0x34] sm:$0xf]
    %v244 = vld [vmem:[%s5 + $0x38] sm:$0xf]
    %v245 = vld [vmem:[%s5 + $0x3c] sm:$0xf]
    %v246 = vld [vmem:[%s6] sm:$0x1]
    %v247 = vpack.c.bf16 %v229, %v228
    %v249 = vlaneseq
    %v250 = vshrl.u32 %v249, 7
    %v251 = vsub.s32 0, %v250
    %v252 = vrot.slane %v246, %v251
    %v270 = vunpack.c.l.b16 %v230
    %v271 = vunpack.c.l.b16 %v231
    %v272 = vunpack.c.l.b16 %v232
    %v273 = vunpack.c.l.b16 %v233
    %v274 = vunpack.c.l.b16 %v234
    %v275 = vunpack.c.l.b16 %v235
    %v276 = vunpack.c.l.b16 %v236
    %v277 = vunpack.c.l.b16 %v237
    %v278 = vunpack.c.l.b16 %v238
    %v279 = vunpack.c.l.b16 %v239
    %v280 = vunpack.c.l.b16 %v240
    %v281 = vunpack.c.l.b16 %v241
    %v282 = vunpack.c.l.b16 %v242
    %v283 = vunpack.c.l.b16 %v243
    %v284 = vunpack.c.l.b16 %v244
    %v285 = vunpack.c.l.b16 %v245
    %v286 = vpack.c.b16 %v271, %v270
    %v287 = vpack.c.b16 %v273, %v272
    %v288 = vpack.c.b16 %v275, %v274
    %v289 = vpack.c.b16 %v277, %v276
    %v290 = vpack.c.b16 %v279, %v278
    %v291 = vpack.c.b16 %v281, %v280
    %v292 = vpack.c.b16 %v283, %v282
    %v293 = vpack.c.b16 %v285, %v284
    %302 = vmatprep.subr.bf16.mxu0 0
    %303 = vmatpush1.bf16.msra.mxu0 %v286
    %304 = vmatprep.subr.bf16.mxu0 0
    %305 = vmatpush1.bf16.msra.mxu0 %v287
    %306 = vmatprep.subr.bf16.mxu0 0
    %307 = vmatpush1.bf16.msra.mxu0 %v288
    %308 = vmatprep.subr.bf16.mxu0 0
    %309 = vmatpush1.bf16.msra.mxu0 %v289
    %310 = vmatprep.subr.bf16.mxu0 0
    %311 = vmatpush1.bf16.msra.mxu0 %v290
    %312 = vmatprep.subr.bf16.mxu0 0
    %313 = vmatpush1.bf16.msra.mxu0 %v291
    %314 = vmatprep.subr.bf16.mxu0 0
    %315 = vmatpush1.bf16.msra.mxu0 %v292
    %316 = vmatprep.subr.bf16.mxu0 0
    %317 = vmatpush1.bf16.msra.mxu0 %v293
    %318 = vmatprep.subr.bf16.mxu0 0
    %319 = vmatpush1.bf16.msra.mxu0 0
    %320 = vmatprep.subr.bf16.mxu0 0
    %321 = vmatpush1.bf16.msra.mxu0 0
    %322 = vmatprep.subr.bf16.mxu0 0
    %323 = vmatpush1.bf16.msra.mxu0 0
    %324 = vmatprep.subr.bf16.mxu0 0
    %325 = vmatpush1.bf16.msra.mxu0 0
    %326 = vmatprep.subr.bf16.mxu0 0
    %327 = vmatpush1.bf16.msra.mxu0 0
    %328 = vmatprep.subr.bf16.mxu0 0
    %329 = vmatpush1.bf16.msra.mxu0 0
    %330 = vmatprep.subr.bf16.mxu0 0
    %331 = vmatpush1.bf16.msra.mxu0 0
    %332 = vmatprep.subr.bf16.mxu0 0
    %333 = vmatpush1.bf16.msra.mxu0 0
    %334 = vmatprep.mubr.bf16.mxu0 0
    %335 = vmatmul.mubr.bf16.gmra.mrb[0].mxu0 %v247
    %v336 = vpop.f32.mrb[0].mxu0
    %v337 = vadd.f32 %v252, %v336
    %v338 = vpop.f32.mrb[0].mxu0
    %v339 = vpop.f32.mrb[0].mxu0
    %v340 = vadd.f32 %v252, %v339
    %v341 = vpop.f32.mrb[0].mxu0
    %342 = vdwg.mxu0
    %vm343 = vcmask 130048
    %344 = vst.msk [vmem:[#allocation5] sm:$0xff] %vm343, %v337
    %345 = vst.msk [vmem:[#allocation5 + $0x8] sm:$0xff] %vm343, %v340
    // Predicated region
    $region34: #{tpu_custom_call.1} parent=1 // pred_check
      _
    $region35: #{tpu_custom_call.1} parent=1 // pred_check_branch
      %347 = sbr.rel (0) target = $region37
    $region36: #{tpu_custom_call.1} parent=1 // pred_region
      %s349 = ssub.s32 256, 256
      %350 = vsyncadd [#allocation4], %s349
      %s351 = sshll.u32 [#allocation5], 4
      %s352 = int_to_ptr.vmem [resolvable:$true] %s351
      %357 = dma.vmem_to_hbm [thread:$0]  %s352, 256, %s7, [#allocation4], 128, 128, 8
    $region37: #{tpu_custom_call.1} parent=1 // pred_fallthru
      _
    // Predicated region
    $region38: #{tpu_custom_call.1} parent=1 // pred_check
      _
    $region39: #{tpu_custom_call.1} parent=1 // pred_check_branch
      %359 = sbr.rel (0) target = $region41
    $region40: #{tpu_custom_call.1} parent=1 // pred_region
      %360 = dma.done [#allocation4], 256
    $region41: #{tpu_custom_call.1} parent=1 // pred_fallthru
      _
    %361 = vsyncpa [#allocation3], 1
    %362 = vsyncpa [#allocation4], 1

</llo_original>
